<compile_context>
chip_gen: v7x
topology: tpu7x:2x2x1
jax: 0.10.0
libtpu: 0.0.40
codegen_flags: <defaults>
</compile_context>

<pallas_src>
import functools

import jax
import jax.numpy as jnp
from jax import lax
from jax.experimental import pallas as pl
from jax.experimental.pallas import tpu as pltpu

LANES = 128
SUBLANES = 8
FOLD_ROWS = 64          # rows folded per inner-loop iteration (stays in vregs)
MAX_BLOCK_ROWS = 2048   # 2048 x 128 f32 = 1 MiB per input tile
NUM_CORES = 2           # leading "parallel" grid axis (both TCs on v7x)


def _dice_sums_kernel(p_ref, t_ref, acc_ref, *, total_rows, block_rows,
                      total_steps, steps_per_core, num_cores):
    """Accumulate per-core (3, 8, 128) partial sums of p*t, p*p and t*t.

    p_ref, t_ref : (block_rows, LANES) VMEM input tiles
    acc_ref      : (3, SUBLANES, LANES) VMEM output block; resident across the
                   inner ("arbitrary") grid axis -> acts as the accumulator.
    """
    c = pl.program_id(0)   # core axis ("parallel")
    i = pl.program_id(1)   # reduction axis ("arbitrary")

    @pl.when(i == 0)
    def _init():
        acc_ref[...] = jnp.zeros_like(acc_ref)

    chunk_rows = block_rows if block_rows <= FOLD_ROWS else FOLD_ROWS
    n_chunks = block_rows // chunk_rows          # exact by construction
    last = total_steps - 1

    def accumulate(masked):
        def fold(x):
            # (chunk_rows, LANES) -> (SUBLANES, LANES): pure elementwise vreg adds.
            return x.reshape(chunk_rows // SUBLANES, SUBLANES, LANES).sum(axis=0)

        def body(k, carry):
            pt, pp, tt = carry
            r0 = pl.multiple_of(k * chunk_rows, chunk_rows)
            p = p_ref[pl.ds(r0, chunk_rows), :].astype(jnp.float32)
            t = t_ref[pl.ds(r0, chunk_rows), :].astype(jnp.float32)
            if masked:
                # Only the final (partial) block ever runs this branch.
                row = (last * block_rows + r0
                       + lax.broadcasted_iota(jnp.int32, (chunk_rows, LANES), 0))
                valid = row < total_rows
                p = jnp.where(valid, p, 0.0)
                t = jnp.where(valid, t, 0.0)
            return pt + fold(p * t), pp + fold(p * p), tt + fold(t * t)

        z = jnp.zeros((SUBLANES, LANES), jnp.float32)
        pt, pp, tt = lax.fori_loop(0, n_chunks, body, (z, z, z),
                                   unroll=2 if n_chunks > 1 else 1)
        acc_ref[0] += pt
        acc_ref[1] += pp
        acc_ref[2] += tt

    needs_mask = (total_rows % block_rows) != 0            # static
    overflow = num_cores * steps_per_core > total_steps    # static

    if not needs_mask and not overflow:
        # Every (c, i) maps to a distinct, full block: no gating at all.
        accumulate(masked=False)
    else:
        g = c * steps_per_core + i   # global step index
        if needs_mask:
            @pl.when(g < last)
            def _full():
                accumulate(masked=False)

            @pl.when(g == last)
            def _tail():
                accumulate(masked=True)
        else:
            @pl.when(g <= last)
            def _full():
                accumulate(masked=False)
        # g > last: overflow step on the trailing core; contributes nothing
        # (its input block index is clamped in the index_map and never read).


def _round_up(x, m):
    return ((x + m - 1) // m) * m


def _sublane_multiple(dtype):
    # f32 -> 8, bf16/f16 -> 16, int8/fp8 -> 32 (packed dtypes need more sublanes).
    return max(SUBLANES, 32 // jnp.dtype(dtype).itemsize)


def _choose_block_rows(rows, mult):
    if rows >= MAX_BLOCK_ROWS:
        return MAX_BLOCK_ROWS                     # multiple of 32 and 64
    bl = _round_up(rows, mult)
    if bl > FOLD_ROWS:
        bl = _round_up(bl, FOLD_ROWS)             # keeps inner chunking exact
    return bl


def dice_loss(prediction, target):
    """Pallas implementation of DiceLoss.forward (smooth is unused upstream)."""
    p = prediction.reshape(-1)
    t = target.reshape(-1)
    n = p.shape[0]

    # Elements that cannot fill a 128-lane row (< 128 of them): plain JAX sums.
    n_main = (n // LANES) * LANES
    if n_main < n:
        p_tail = p[n_main:].astype(jnp.float32)
        t_tail = t[n_main:].astype(jnp.float32)
        tail_sums = jnp.stack([jnp.sum(p_tail * t_tail),
                               jnp.sum(p_tail * p_tail),
                               jnp.sum(t_tail * t_tail)])
    else:
        tail_sums = jnp.zeros((3,), jnp.float32)

    if n_main == 0:
        sums = tail_sums
    else:
        rows = n_main // LANES
        p2 = p[:n_main].reshape(rows, LANES)   # contiguous reshape: no HBM copy
        t2 = t[:n_main].reshape(rows, LANES)

        mult = max(_sublane_multiple(p2.dtype), _sublane_multiple(t2.dtype))
        block_rows = _choose_block_rows(rows, mult)
        total_steps = pl.cdiv(rows, block_rows)
        steps_per_core = pl.cdiv(total_steps, NUM_CORES)
        grid = (NUM_CORES, steps_per_core)

        def in_index(c, i):
            # Clamp overflow steps of the trailing core onto the last valid
            # block (their contribution is skipped inside the kernel).
            return (jnp.minimum(c * steps_per_core + i, total_steps - 1), 0)

        kernel = functools.partial(
            _dice_sums_kernel, total_rows=rows, block_rows=block_rows,
            total_steps=total_steps, steps_per_core=steps_per_core,
            num_cores=NUM_CORES)

        in_bytes = n_main * (p2.dtype.itemsize + t2.dtype.itemsize)
        out_bytes = NUM_CORES * 3 * SUBLANES * LANES * 4
        partials = pl.pallas_call(
            kernel,
            out_shape=jax.ShapeDtypeStruct((NUM_CORES * 3, SUBLANES, LANES),
                                           jnp.float32),
            grid=grid,
            in_specs=[pl.BlockSpec((block_rows, LANES), in_index),
                      pl.BlockSpec((block_rows, LANES), in_index)],
            out_specs=pl.BlockSpec((3, SUBLANES, LANES),
                                   lambda c, i: (c, 0, 0)),
            compiler_params=pltpu.CompilerParams(
                dimension_semantics=("parallel", "arbitrary"),
                vmem_limit_bytes=32 * 1024 * 1024,
            ),
            cost_estimate=pl.CostEstimate(
                flops=6 * n_main, transcendentals=0,
                bytes_accessed=in_bytes + out_bytes),
        )(p2, t2)

        # (cores*3, 8, 128) partials -> three scalars (tiny XLA reduce).
        main_sums = partials.reshape(NUM_CORES, 3, -1).sum(axis=(0, 2))
        sums = main_sums + tail_sums

    intersection, pred_sum, target_sum = sums[0], sums[1], sums[2]
    # Note: NaN for all-zero inputs matches the PyTorch forward (smooth unused).
    return 1.0 - 2.0 * intersection / (pred_sum + target_sum)


def _dice_loss_ref(prediction, target):
    p = prediction.reshape(-1).astype(jnp.float32)
    t = target.reshape(-1).astype(jnp.float32)
    inter = jnp.sum(p * t)
    psum = jnp.sum(p * p)
    tsum = jnp.sum(t * t)
    return 1.0 - 2.0 * inter / (psum + tsum)


if __name__ == "__main__":
    key = jax.random.PRNGKey(0)
    k_pred, k_tgt = jax.random.split(key)

    # NCHW, matching the PyTorch conv / segmentation convention.
    prediction = jax.nn.sigmoid(
        jax.random.normal(k_pred, (2, 4, 16, 16), dtype=jnp.float32))
    target = jax.random.bernoulli(k_tgt, p=0.5, shape=(2, 4, 16, 16)).astype(
        jnp.float32)

    loss = dice_loss(prediction, target)
    jax.block_until_ready(loss)

    ref = _dice_loss_ref(prediction, target)
    assert jnp.allclose(loss, ref, rtol=1e-5, atol=1e-5), (loss, ref)

    print("KERNEL_OK")
</pallas_src>

<mosaic_0001>
module attributes {stable_mosaic.version = 11 : i64} {
  func.func @_dice_sums_kernel(%arg0: i32, %arg1: i32, %arg2: memref<16x128xf32, #tpu.memory_space<vmem>>, %arg3: memref<16x128xf32, #tpu.memory_space<vmem>>, %arg4: memref<3x8x128xf32, #tpu.memory_space<vmem>>) attributes {dimension_semantics = [#tpu.dimension_semantics<parallel>, #tpu.dimension_semantics<arbitrary>], iteration_bounds = array<i64: 2, 1>, scalar_prefetch = 0 : i64, scratch_operands = 0 : i64, tpu.core_type = #tpu.core_type<tc>, window_params = [{transform_indices = @transform_0, window_bounds = array<i64: 16, 128>}, {transform_indices = @transform_1, window_bounds = array<i64: 16, 128>}, {transform_indices = @transform_2, window_bounds = array<i64: 3, 8, 128>}]} {
    %c0_i32 = arith.constant 0 : i32
    %0 = arith.cmpi eq, %arg1, %c0_i32 : i32
    %1 = arith.extui %0 : i1 to i32
    %c0_i32_0 = arith.constant 0 : i32
    %2 = arith.cmpi ne, %1, %c0_i32_0 : i32
    scf.if %2 {
      %cst = arith.constant 0.000000e+00 : f32
      %8 = vector.broadcast %cst : f32 to vector<3x8x128xf32>
      %c0 = arith.constant 0 : index
      %c0_3 = arith.constant 0 : index
      %c0_4 = arith.constant 0 : index
      %9 = vector.load %arg4[%c0, %c0_3, %c0_4] : memref<3x8x128xf32, #tpu.memory_space<vmem>>, vector<3x8x128xf32>
      tpu.vector_store %arg4[%c0, %c0_3, %c0_4], %8 {strides = array<i32>} : memref<3x8x128xf32, #tpu.memory_space<vmem>>, vector<3x8x128xf32>,
    } else {
    }
    %c1_i32 = arith.constant 1 : i32
    %3 = arith.muli %arg0, %c1_i32 : i32
    %4 = arith.addi %3, %arg1 : i32
    %c0_i32_1 = arith.constant 0 : i32
    %5 = arith.cmpi sle, %4, %c0_i32_1 : i32
    %6 = arith.extui %5 : i1 to i32
    %c0_i32_2 = arith.constant 0 : i32
    %7 = arith.cmpi ne, %6, %c0_i32_2 : i32
    scf.if %7 {
      %cst = arith.constant 0.000000e+00 : f32
      %8 = vector.broadcast %cst : f32 to vector<8x128xf32>
      %c0_i32_3 = arith.constant 0 : i32
      %c16_i32 = arith.constant 16 : i32
      %9 = arith.muli %c0_i32_3, %c16_i32 : i32
      %10 = tpu.assume_multiple %9, 16 : i32
      %11 = arith.index_cast %10 : i32 to index
      %c0 = arith.constant 0 : index
      %12 = vector.load %arg2[%11, %c0] : memref<16x128xf32, #tpu.memory_space<vmem>>, vector<16x128xf32>
      %13 = arith.index_cast %10 : i32 to index
      %c0_4 = arith.constant 0 : index
      %14 = vector.load %arg3[%13, %c0_4] : memref<16x128xf32, #tpu.memory_space<vmem>>, vector<16x128xf32>
      %15 = arith.mulf %12, %14 : vector<16x128xf32>
      %16 = vector.shape_cast %15 : vector<16x128xf32> to vector<2x8x128xf32>
      %cst_5 = arith.constant dense<0.000000e+00> : vector<8x128xf32>
      %17 = vector.multi_reduction <add>, %16, %cst_5 [0] : vector<2x8x128xf32> to vector<8x128xf32>
      %18 = arith.addf %8, %17 : vector<8x128xf32>
      %19 = arith.mulf %12, %12 : vector<16x128xf32>
      %20 = vector.shape_cast %19 : vector<16x128xf32> to vector<2x8x128xf32>
      %cst_6 = arith.constant dense<0.000000e+00> : vector<8x128xf32>
      %21 = vector.multi_reduction <add>, %20, %cst_6 [0] : vector<2x8x128xf32> to vector<8x128xf32>
      %22 = arith.addf %8, %21 : vector<8x128xf32>
      %23 = arith.mulf %14, %14 : vector<16x128xf32>
      %24 = vector.shape_cast %23 : vector<16x128xf32> to vector<2x8x128xf32>
      %cst_7 = arith.constant dense<0.000000e+00> : vector<8x128xf32>
      %25 = vector.multi_reduction <add>, %24, %cst_7 [0] : vector<2x8x128xf32> to vector<8x128xf32>
      %26 = arith.addf %8, %25 : vector<8x128xf32>
      %c1_i32_8 = arith.constant 1 : i32
      %c0_9 = arith.constant 0 : index
      %c0_10 = arith.constant 0 : index
      %c0_11 = arith.constant 0 : index
      %27 = vector.load %arg4[%c0_9, %c0_10, %c0_11] : memref<3x8x128xf32, #tpu.memory_space<vmem>>, vector<1x8x128xf32>
      %28 = vector.shape_cast %27 : vector<1x8x128xf32> to vector<8x128xf32>
      %29 = arith.addf %28, %18 : vector<8x128xf32>
      %c0_12 = arith.constant 0 : index
      %c0_13 = arith.constant 0 : index
      %c0_14 = arith.constant 0 : index
      %30 = vector.load %arg4[%c0_12, %c0_13, %c0_14] : memref<3x8x128xf32, #tpu.memory_space<vmem>>, vector<1x8x128xf32>
      %31 = vector.shape_cast %30 : vector<1x8x128xf32> to vector<8x128xf32>
      %32 = vector.shape_cast %29 : vector<8x128xf32> to vector<1x8x128xf32>
      tpu.vector_store %arg4[%c0_12, %c0_13, %c0_14], %32 {strides = array<i32>} : memref<3x8x128xf32, #tpu.memory_space<vmem>>, vector<1x8x128xf32>,
      %c1 = arith.constant 1 : index
      %c0_15 = arith.constant 0 : index
      %c0_16 = arith.constant 0 : index
      %33 = vector.load %arg4[%c1, %c0_15, %c0_16] : memref<3x8x128xf32, #tpu.memory_space<vmem>>, vector<1x8x128xf32>
      %34 = vector.shape_cast %33 : vector<1x8x128xf32> to vector<8x128xf32>
      %35 = arith.addf %34, %22 : vector<8x128xf32>
      %c1_17 = arith.constant 1 : index
      %c0_18 = arith.constant 0 : index
      %c0_19 = arith.constant 0 : index
      %36 = vector.load %arg4[%c1_17, %c0_18, %c0_19] : memref<3x8x128xf32, #tpu.memory_space<vmem>>, vector<1x8x128xf32>
      %37 = vector.shape_cast %36 : vector<1x8x128xf32> to vector<8x128xf32>
      %38 = vector.shape_cast %35 : vector<8x128xf32> to vector<1x8x128xf32>
      tpu.vector_store %arg4[%c1_17, %c0_18, %c0_19], %38 {strides = array<i32>} : memref<3x8x128xf32, #tpu.memory_space<vmem>>, vector<1x8x128xf32>,
      %c2 = arith.constant 2 : index
      %c0_20 = arith.constant 0 : index
      %c0_21 = arith.constant 0 : index
      %39 = vector.load %arg4[%c2, %c0_20, %c0_21] : memref<3x8x128xf32, #tpu.memory_space<vmem>>, vector<1x8x128xf32>
      %40 = vector.shape_cast %39 : vector<1x8x128xf32> to vector<8x128xf32>
      %41 = arith.addf %40, %26 : vector<8x128xf32>
      %c2_22 = arith.constant 2 : index
      %c0_23 = arith.constant 0 : index
      %c0_24 = arith.constant 0 : index
      %42 = vector.load %arg4[%c2_22, %c0_23, %c0_24] : memref<3x8x128xf32, #tpu.memory_space<vmem>>, vector<1x8x128xf32>
      %43 = vector.shape_cast %42 : vector<1x8x128xf32> to vector<8x128xf32>
      %44 = vector.shape_cast %41 : vector<8x128xf32> to vector<1x8x128xf32>
      tpu.vector_store %arg4[%c2_22, %c0_23, %c0_24], %44 {strides = array<i32>} : memref<3x8x128xf32, #tpu.memory_space<vmem>>, vector<1x8x128xf32>,
    } else {
    }
    return
  }
  func.func @transform_0(%arg0: i32, %arg1: i32) -> (i32, i32) {
    %c1_i32 = arith.constant 1 : i32
    %0 = arith.muli %arg0, %c1_i32 : i32
    %1 = arith.addi %0, %arg1 : i32
    %c0_i32 = arith.constant 0 : i32
    %2 = arith.minsi %1, %c0_i32 : i32
    %c0_i32_0 = arith.constant 0 : i32
    %c0_i32_1 = arith.constant 0 : i32
    return %2, %c0_i32_0 : i32, i32
  }
  func.func @transform_1(%arg0: i32, %arg1: i32) -> (i32, i32) {
    %c1_i32 = arith.constant 1 : i32
    %0 = arith.muli %arg0, %c1_i32 : i32
    %1 = arith.addi %0, %arg1 : i32
    %c0_i32 = arith.constant 0 : i32
    %2 = arith.minsi %1, %c0_i32 : i32
    %c0_i32_0 = arith.constant 0 : i32
    %c0_i32_1 = arith.constant 0 : i32
    return %2, %c0_i32_0 : i32, i32
  }
  func.func @transform_2(%arg0: i32, %arg1: i32) -> (i32, i32, i32) {
    %c0_i32 = arith.constant 0 : i32
    %c0_i32_0 = arith.constant 0 : i32
    %c0_i32_1 = arith.constant 0 : i32
    return %arg0, %c0_i32, %c0_i32_0 : i32, i32, i32
  }
}

</mosaic_0001>

<llo_original>
// kernel: tpu_custom_call.1
$region0: #{tpu_custom_call.1}
  #allocation0 [shape = 'u32[]', space=smem, size = 0x4, offset = 0x4, fixed_abs, tag = 'smem constant byte address 0x4 - core index']
  #allocation1 [shape = 'u32[144,128]{1,0:T(1,128)}', space=vmem, size = 0x12000, scoped, tag = 'internal scratch']
  %s0 = inlined_call_operand.hbm [shape: f32[16,128], index: 0, kind: input, shape index: {}]
  %s1 = inlined_call_operand.hbm [shape: f32[16,128], index: 1, kind: input, shape index: {}]
  %s2 = inlined_call_operand.hbm [shape: f32[6,8,128], index: 2, kind: output, shape index: {}]
  %s3 = sld [smem:[#allocation0]]
  $region57: #{tpu_custom_call.1} parent=0
    _
  %s5 = ssub.s32 1, %s3
  %s6 = scalar_select 0, %s5, %s3
  $region1: #{tpu_custom_call.1} parent=0
    #allocation2 [shape = 'u8[16384]{0}', space=vmem, size = 0x4000, scoped, tag = 'input window, operand 0']
    #allocation3 [shape = 's32[2]{0}', space=sflag, size = 0x8, scoped, tag = 'scoped memory for tpu_custom_call.1']
    #allocation4 [shape = 's32[2]{0}', space=sflag, size = 0x8, scoped, tag = 'scoped memory for tpu_custom_call.1']
    #allocation5 [shape = 'u8[16384]{0}', space=vmem, size = 0x4000, scoped, tag = 'input window, operand 1']
    #allocation6 [shape = 's32[2]{0}', space=sflag, size = 0x8, scoped, tag = 'scoped memory for tpu_custom_call.1']
    #allocation7 [shape = 'u8[24576]{0}', space=vmem, size = 0x6000, scoped, tag = 'output window, operand 0']
    %7 = vsyncpa [#allocation3], 0
    %s8 = scalar_lea.sflag [#allocation3], 1
    %9 = vsyncpa %s8, 0
    %10 = vsyncpa [#allocation6], 0
    %s11 = scalar_lea.sflag [#allocation6], 1
    %12 = vsyncpa %s11, 0
    %13 = vsyncpa [#allocation4], 0
    %s14 = scalar_lea.sflag [#allocation4], 1
    %15 = vsyncpa %s14, 0
    loop: start=0, step=1, limit=4
    $region2: #{tpu_custom_call.1} parent=1 // loop_pre_header
      _
    $region3: #{tpu_custom_call.1} parent=1 // loop_header
      %s17 = sphi 0, %s21
      %p18 = scmp.ge.s32.totalorder %s17, 4
      %s24 = sphi 0, %s36
      %s25 = sphi 0, %s32
      %s26 = sphi 0, %s24
      %s27 = sphi 0, %s25
      %s28 = sphi 0, %s26
      %s29 = sphi 0, %s27
      %s45 = sphi 0, %s47
      %s48 = sphi 0, %s45
      %s49 = sphi 0, %s48
      %s65 = sphi 0, %s49
      %s77 = sphi 0, %s79
      %s80 = sphi 0, %s77
      %s81 = sphi 0, %s80
      %s97 = sphi 0, %s81
      %s103 = sphi 0, %s105
      %s106 = sphi 0, %s103
      %s107 = sphi 0, %s106
      %s123 = sphi 0, %s107
    $region4: #{tpu_custom_call.1} parent=1 // loop_header_branch
      %20 = sbr.rel (%p18) target = $region8
    $region5: #{tpu_custom_call.1} parent=1 // loop_body
      %s22 = ssub.s32 %s17, 1
      %s23 = ssub.s32 %s17, 2
      %s30 = sadd.s32 1, %s25
      %p31 = scmp.ge.s32.totalorder %s30, 1
      %s32 = scalar_select %p31, 0, %s30
      %s33 = sadd.s32 1, %s24
      %s34 = scalar_select %p31, %s33, %s24
      %p35 = scmp.ge.s32.totalorder %s34, 2
      %s36 = scalar_select %p35, 0, %s34
      %s37 = sadd.s32 %s24, %s25
      %p38 = scmp.lt.s32.totalorder %s37, 0
      %s39 = scalar_select %p38, %s37, 0
      %s40 = sadd.s32 %s36, %s32
      %p41 = scmp.lt.s32.totalorder %s40, 0
      %s42 = scalar_select %p41, %s40, 0
      %s43 = ssub.s32 %s39, %s42
      %p44 = scmp.eq.s32.totalorder %s43, 0
      %s46 = sadd.s32 %s45, 1
      %s47 = scalar_select %p44, %s45, %s46
      %p50 = pneg %p44
      %p51 = scmp.eq.s32.totalorder %s17, 1
      %p52 = por %p50, %p51
      %p53 = scmp.ne.s32.totalorder %s45, %s48
      %p54 = scmp.eq.s32.totalorder %s17, 0
      %p55 = por %p53, %p54
      %p56 = scmp.ne.s32.totalorder %s45, %s48
      %p57 = scmp.eq.s32.totalorder %s22, 1
      %p58 = por %p56, %p57
      %p59 = scmp.ne.s32.totalorder %s48, %s49
      %p60 = scmp.eq.s32.totalorder %s22, 0
      %p61 = por %p59, %p60
      %p62 = scmp.ne.s32.totalorder %s48, %s49
      %p63 = scmp.eq.s32.totalorder %s23, 1
      %p64 = por %p62, %p63
      %p66 = scmp.ne.s32.totalorder %s49, %s65
      %p67 = scmp.eq.s32.totalorder %s23, 0
      %p68 = por %p66, %p67
      %s69 = sadd.s32 %s24, %s25
      %p70 = scmp.lt.s32.totalorder %s69, 0
      %s71 = scalar_select %p70, %s69, 0
      %s72 = sadd.s32 %s36, %s32
      %p73 = scmp.lt.s32.totalorder %s72, 0
      %s74 = scalar_select %p73, %s72, 0
      %s75 = ssub.s32 %s71, %s74
      %p76 = scmp.eq.s32.totalorder %s75, 0
      %s78 = sadd.s32 %s77, 1
      %s79 = scalar_select %p76, %s77, %s78
      %p82 = pneg %p76
      %p83 = scmp.eq.s32.totalorder %s17, 1
      %p84 = por %p82, %p83
      %p85 = scmp.ne.s32.totalorder %s77, %s80
      %p86 = scmp.eq.s32.totalorder %s17, 0
      %p87 = por %p85, %p86
      %p88 = scmp.ne.s32.totalorder %s77, %s80
      %p89 = scmp.eq.s32.totalorder %s22, 1
      %p90 = por %p88, %p89
      %p91 = scmp.ne.s32.totalorder %s80, %s81
      %p92 = scmp.eq.s32.totalorder %s22, 0
      %p93 = por %p91, %p92
      %p94 = scmp.ne.s32.totalorder %s80, %s81
      %p95 = scmp.eq.s32.totalorder %s23, 1
      %p96 = por %p94, %p95
      %p98 = scmp.ne.s32.totalorder %s81, %s97
      %p99 = scmp.eq.s32.totalorder %s23, 0
      %p100 = por %p98, %p99
      %s101 = ssub.s32 %s24, %s36
      %p102 = scmp.eq.s32.totalorder %s101, 0
      %s104 = sadd.s32 %s103, 1
      %s105 = scalar_select %p102, %s103, %s104
      %p108 = pneg %p102
      %p109 = scmp.eq.s32.totalorder %s17, 1
      %p110 = por %p108, %p109
      %p111 = scmp.ne.s32.totalorder %s103, %s106
      %p112 = scmp.eq.s32.totalorder %s17, 0
      %p113 = por %p111, %p112
      %p114 = scmp.ne.s32.totalorder %s103, %s106
      %p115 = scmp.eq.s32.totalorder %s22, 1
      %p116 = por %p114, %p115
      %p117 = scmp.ne.s32.totalorder %s106, %s107
      %p118 = scmp.eq.s32.totalorder %s22, 0
      %p119 = por %p117, %p118
      %p120 = scmp.ne.s32.totalorder %s106, %s107
      %p121 = scmp.eq.s32.totalorder %s23, 1
      %p122 = por %p120, %p121
      %p124 = scmp.ne.s32.totalorder %s107, %s123
      %p125 = scmp.eq.s32.totalorder %s23, 0
      %p126 = por %p124, %p125
      %p127 = scmp.le.s32.totalorder 1, %s17
      %p128 = scmp.lt.s32.totalorder %s17, 3
      %p129 = pnand %p127, %p128
      %p130 = pneg %p129
      // Predicated region
      $region9: #{tpu_custom_call.1} parent=5 // pred_check
        _
      $region10: #{tpu_custom_call.1} parent=5 // pred_check_branch
        %132 = sbr.rel (%p129) target = $region12
      $region11: #{tpu_custom_call.1} parent=5 // pred_region
        %s133 = ssub.s32 %s17, 1
      $region12: #{tpu_custom_call.1} parent=5 // pred_fallthru
        _
      %p134 = scmp.lt.s32.totalorder %s17, 2
      // Predicated region
      $region13: #{tpu_custom_call.1} parent=5 // pred_check
        %p135 = pneg %p134
      $region14: #{tpu_custom_call.1} parent=5 // pred_check_branch
        %137 = sbr.rel (%p135) target = $region16
      $region15: #{tpu_custom_call.1} parent=5 // pred_region
        // Predicated region
        $region17: #{tpu_custom_call.1} parent=15 // pred_check
          %p138 = pneg %p55
        $region18: #{tpu_custom_call.1} parent=15 // pred_check_branch
          %140 = sbr.rel (%p138) target = $region20
        $region19: #{tpu_custom_call.1} parent=15 // pred_region
          %s141 = sand.u32 %s45, 1
          %s142 = scalar_lea.sflag [#allocation3], %s141
          %s143 = sand.u32 %s45, 1
          %s144 = smul.addr %s143, 16
          %s145 = scalar_lea.vmem [#allocation2], %s144
          %s146 = sadd.s32 %s24, %s25
          %p147 = scmp.lt.s32.totalorder %s146, 0
          %s148 = scalar_select %p147, %s146, 0
          %s149 = smul.u32 2, %s148
          %s151 = ssub.s32 256, 256
          %152 = vsyncadd %s142, %s151
          %s153 = smul.addr %s149, 128
          %s154 = scalar_lea.hbm %s0, %s153
          %s155 = sshll.u32 %s145, 4
          %s156 = int_to_ptr.vmem [resolvable:$true] %s155
          %161 = dma.hbm_to_vmem [thread:$0]  %s154, 256, %s156, %s142, 128, 128, 8
        $region20: #{tpu_custom_call.1} parent=15 // pred_fallthru
          _
        // Predicated region
        $region21: #{tpu_custom_call.1} parent=15 // pred_check
          %p162 = pneg %p87
        $region22: #{tpu_custom_call.1} parent=15 // pred_check_branch
          %164 = sbr.rel (%p162) target = $region24
        $region23: #{tpu_custom_call.1} parent=15 // pred_region
          %s165 = sand.u32 %s77, 1
          %s166 = scalar_lea.sflag [#allocation6], %s165
          %s167 = sand.u32 %s77, 1
          %s168 = smul.addr %s167, 16
          %s169 = scalar_lea.vmem [#allocation5], %s168
          %s170 = sadd.s32 %s24, %s25
          %p171 = scmp.lt.s32.totalorder %s170, 0
          %s172 = scalar_select %p171, %s170, 0
          %s173 = smul.u32 2, %s172
          %s175 = ssub.s32 256, 256
          %176 = vsyncadd %s166, %s175
          %s177 = smul.addr %s173, 128
          %s178 = scalar_lea.hbm %s1, %s177
          %s179 = sshll.u32 %s169, 4
          %s180 = int_to_ptr.vmem [resolvable:$true] %s179
          %185 = dma.hbm_to_vmem [thread:$0]  %s178, 256, %s180, %s166, 128, 128, 8
        $region24: #{tpu_custom_call.1} parent=15 // pred_fallthru
          _
      $region16: #{tpu_custom_call.1} parent=5 // pred_fallthru
        _
      %p186 = scmp.le.s32.totalorder 1, %s17
      %p187 = scmp.lt.s32.totalorder %s17, 3
      %p188 = pnand %p186, %p187
      %p189 = pneg %p188
      // Predicated region
      $region25: #{tpu_custom_call.1} parent=5 // pred_check
        _
      $region26: #{tpu_custom_call.1} parent=5 // pred_check_branch
        %191 = sbr.rel (%p188) target = $region28
      $region27: #{tpu_custom_call.1} parent=5 // pred_region
        %s192 = ssub.s32 %s17, 1
        %s193 = sand.u32 %s48, 1
        %s194 = scalar_lea.sflag [#allocation3], %s193
        %s195 = sand.u32 %s48, 1
        %s196 = smul.addr %s195, 16
        %s197 = scalar_lea.vmem [#allocation2], %s196
        // Predicated region
        $region29: #{tpu_custom_call.1} parent=27 // pred_check
          %p198 = pneg %p61
        $region30: #{tpu_custom_call.1} parent=27 // pred_check_branch
          %200 = sbr.rel (%p198) target = $region32
        $region31: #{tpu_custom_call.1} parent=27 // pred_region
          %201 = dma.done %s194, 256
        $region32: #{tpu_custom_call.1} parent=27 // pred_fallthru
          _
        %s202 = sand.u32 %s80, 1
        %s203 = scalar_lea.sflag [#allocation6], %s202
        %s204 = sand.u32 %s80, 1
        %s205 = smul.addr %s204, 16
        %s206 = scalar_lea.vmem [#allocation5], %s205
        // Predicated region
        $region33: #{tpu_custom_call.1} parent=27 // pred_check
          %p207 = pneg %p93
        $region34: #{tpu_custom_call.1} parent=27 // pred_check_branch
          %209 = sbr.rel (%p207) target = $region36
        $region35: #{tpu_custom_call.1} parent=27 // pred_region
          %210 = dma.done %s203, 256
        $region36: #{tpu_custom_call.1} parent=27 // pred_fallthru
          _
        %s211 = sand.u32 %s48, 1
        %s212 = scalar_lea.sflag [#allocation3], %s211
        %s213 = sand.u32 %s48, 1
        %s214 = smul.addr %s213, 16
        %s215 = scalar_lea.vmem [#allocation2], %s214
        %p216 = pneg %p61
        %p217 = pneg %p58
        %s218 = sand.u32 %s80, 1
        %s219 = scalar_lea.sflag [#allocation6], %s218
        %s220 = sand.u32 %s80, 1
        %s221 = smul.addr %s220, 16
        %s222 = scalar_lea.vmem [#allocation5], %s221
        %p223 = pneg %p93
        %p224 = pneg %p90
        %p225 = pneg %p119
        %p226 = pneg %p116
        %s227 = sand.u32 %s106, 1
        %s228 = scalar_lea.sflag [#allocation4], %s227
        %s229 = sand.u32 %s106, 1
        %s230 = smul.addr %s229, 24
        %s231 = scalar_lea.vmem [#allocation7], %s230
        %s232 = sadd.s32 %s26, %s27
        %p233 = scmp.lt.s32.totalorder %s232, 0
        %s234 = scalar_select %p233, %s232, 0
        %s235 = smul.u32 2, %s234
        %s236 = sadd.s32 %s26, %s27
        %p237 = scmp.lt.s32.totalorder %s236, 0
        %s238 = scalar_select %p237, %s236, 0
        %s239 = smul.u32 2, %s238
        %s240 = smul.u32 3, %s26
        %p241 = scmp.eq.s32.totalorder %s27, 0
        // Predicated region
        $region37: #{tpu_custom_call.1} parent=27 // pred_check
          %p242 = pneg %p241
        $region38: #{tpu_custom_call.1} parent=27 // pred_check_branch
          %244 = sbr.rel (%p242) target = $region40
        $region39: #{tpu_custom_call.1} parent=27 // pred_region
          %245 = vst [vmem:[%s231] sm:$0xff] 0.0
          %246 = vst [vmem:[%s231 + $0x8] sm:$0xff] 0.0
          %247 = vst [vmem:[%s231 + $0x10] sm:$0xff] 0.0
        $region40: #{tpu_custom_call.1} parent=27 // pred_fallthru
          _
        %s248 = sadd.s32 %s26, %s27
        %p249 = scmp.le.s32.totalorder %s248, 0
        // Predicated region
        $region41: #{tpu_custom_call.1} parent=27 // pred_check
          %p250 = pneg %p249
        $region42: #{tpu_custom_call.1} parent=27 // pred_check_branch
          %252 = sbr.rel (%p250) target = $region44
        $region43: #{tpu_custom_call.1} parent=27 // pred_region
          %v253 = vld [vmem:[%s197] sm:$0xff]
          %v254 = vld [vmem:[%s197 + $0x8] sm:$0xff]
          %v255 = vld [vmem:[%s206] sm:$0xff]
          %v256 = vld [vmem:[%s206 + $0x8] sm:$0xff]
          %v257 = vmul.f32 %v253, %v255
          %v258 = vmul.f32 %v254, %v256
          %v259 = vadd.f32 %v257, %v258
          %v260 = vadd.f32 %v259, 0.0
          %v261 = vmul.f32 %v253, %v253
          %v262 = vmul.f32 %v254, %v254
          %v263 = vadd.f32 %v261, %v262
          %v264 = vadd.f32 %v263, 0.0
          %v265 = vmul.f32 %v255, %v255
          %v266 = vmul.f32 %v256, %v256
          %v267 = vadd.f32 %v265, %v266
          %v268 = vadd.f32 %v267, 0.0
          %v269 = vld [vmem:[%s231] sm:$0xff]
          %v270 = vadd.f32 %v269, %v260
          %271 = vst [vmem:[%s231] sm:$0xff] %v270
          %s272 = scalar_lea.vmem %s231, 8 [#allocation7]
          %v273 = vld [vmem:[%s272] sm:$0xff]
          %v274 = vadd.f32 %v273, %v264
          %275 = vst [vmem:[%s272] sm:$0xff] %v274
          %s276 = scalar_lea.vmem %s231, 16 [#allocation7]
          %v277 = vld [vmem:[%s276] sm:$0xff]
          %v278 = vadd.f32 %v277, %v268
          %279 = vst [vmem:[%s276] sm:$0xff] %v278
        $region44: #{tpu_custom_call.1} parent=27 // pred_fallthru
          _
        %s280 = sand.u32 %s106, 1
        %s281 = scalar_lea.sflag [#allocation4], %s280
        %s282 = sand.u32 %s106, 1
        %s283 = smul.addr %s282, 24
        %s284 = scalar_lea.vmem [#allocation7], %s283
        // Predicated region
        $region45: #{tpu_custom_call.1} parent=27 // pred_check
          %p285 = pneg %p116
        $region46: #{tpu_custom_call.1} parent=27 // pred_check_branch
          %287 = sbr.rel (%p285) target = $region48
        $region47: #{tpu_custom_call.1} parent=27 // pred_region
          %s288 = smul.u32 3, %s26
          %s290 = ssub.s32 384, 384
          %291 = vsyncadd %s281, %s290
          %s292 = smul.addr %s288, 128
          %s293 = scalar_lea.hbm %s2, %s292
          %s294 = sshll.u32 %s284, 4
          %s295 = int_to_ptr.vmem [resolvable:$true] %s294
          %300 = dma.vmem_to_hbm [thread:$0]  %s295, 384, %s293, %s281, 128, 128, 8
        $region48: #{tpu_custom_call.1} parent=27 // pred_fallthru
          _
      $region28: #{tpu_custom_call.1} parent=5 // pred_fallthru
        _
      %p301 = scmp.le.s32.totalorder 2, %s17
      // Predicated region
      $region49: #{tpu_custom_call.1} parent=5 // pred_check
        %p302 = pneg %p301
      $region50: #{tpu_custom_call.1} parent=5 // pred_check_branch
        %304 = sbr.rel (%p302) target = $region52
      $region51: #{tpu_custom_call.1} parent=5 // pred_region
        %s305 = ssub.s32 %s17, 2
        // Predicated region
        $region53: #{tpu_custom_call.1} parent=51 // pred_check
          %p306 = pneg %p122
        $region54: #{tpu_custom_call.1} parent=51 // pred_check_branch
          %308 = sbr.rel (%p306) target = $region56
        $region55: #{tpu_custom_call.1} parent=51 // pred_region
          %s309 = sand.u32 %s107, 1
          %s310 = scalar_lea.sflag [#allocation4], %s309
          %s311 = sand.u32 %s107, 1
          %s312 = smul.addr %s311, 24
          %s313 = scalar_lea.vmem [#allocation7], %s312
          %314 = dma.done %s310, 384
        $region56: #{tpu_custom_call.1} parent=51 // pred_fallthru
          _
      $region52: #{tpu_custom_call.1} parent=5 // pred_fallthru
        _
    $region6: #{tpu_custom_call.1} parent=1 // loop_footer
      %s21 = sadd.s32 1, %s17
    $region7: #{tpu_custom_call.1} parent=1 // loop_footer_branch
      %16 = sbr.rel target = $region3
    $region8: #{tpu_custom_call.1} parent=1 // loop_exit
      _
    %315 = vsyncpa [#allocation3], 1
    %s316 = scalar_lea.sflag [#allocation3], 1
    %317 = vsyncpa %s316, 1
    %318 = vsyncpa [#allocation6], 1
    %s319 = scalar_lea.sflag [#allocation6], 1
    %320 = vsyncpa %s319, 1
    %321 = vsyncpa [#allocation4], 1
    %s322 = scalar_lea.sflag [#allocation4], 1
    %323 = vsyncpa %s322, 1

</llo_original>
